<compile_context>
chip_gen: v7x
topology: tpu7x:2x2x1
jax: 0.10.0
libtpu: 0.0.40
codegen_flags: <defaults>
</compile_context>

<pallas_src>
import jax
import jax.numpy as jnp
import numpy as np
from jax import lax
from jax.experimental import pallas as pl
from jax.experimental.pallas import tpu as pltpu


def _round_up(x, m):
    return (x + m - 1) // m * m


def _balanced_tiles(dim, tile, align):
    """Split `dim` into equal-ish tiles (<= tile), aligned to `align`.

    Returns (tile_size, num_tiles); padded dim == tile_size * num_tiles.
    Balancing avoids near-2x padding waste when dim is just above a tile
    boundary (e.g. n=264 with tile=256 -> 3 tiles of 88... rounded to 96,
    instead of padding to 512).
    """
    padded = _round_up(max(dim, 1), align)
    t = min(_round_up(tile, align), padded)
    k = pl.cdiv(padded, t)
    t = _round_up(pl.cdiv(padded, k), align)
    return t, k


def _cosine_scores_kernel(sb_ref, x_ref, w_ref, colfac_ref, o_ref):
    # sb_ref:     SMEM (1,)     f32  = scale_cls * bias
    # x_ref:      VMEM (TM, F)  raw (unnormalized) feature tile (matmul dtype)
    # w_ref:      VMEM (F, TN)  raw class-weight tile (matmul dtype)
    # colfac_ref: VMEM (1, TN)  f32  = scale_cls * rsqrt(col sum-of-squares)
    # o_ref:      VMEM (TM, TN) output tile
    x = x_ref[...]

    # Raw matmul on the MXU (bf16 operands by default, f32 accumulation).
    # Both L2 normalizations are folded into post-matmul scaling of the
    # small (TM, TN) score tile.
    scores = jnp.dot(x, w_ref[...], preferred_element_type=jnp.float32)

    # Per-row inverse norms of x, in f32 (v5e has no bf16 VPU/EUP); rsqrt goes
    # to the EUP slot.  rsqrt(max(ss, 1e-24)) == 1/max(||x||, 1e-12), matching
    # F.normalize eps semantics.
    xf = x.astype(jnp.float32)
    row_ss = jnp.sum(xf * xf, axis=-1, keepdims=True)          # (TM, 1)
    row_rs = lax.rsqrt(jnp.maximum(row_ss, 1e-24))

    # scale*(bias + xn @ wn) == (x@w) * row_rs * (scale*col_rs) + scale*bias.
    # NOTE: padded rows/columns evaluate to scale*bias (not zero); the wrapper
    # slices them off, they are never consumed.
    out = scores * row_rs * colfac_ref[...] + sb_ref[0]
    o_ref[...] = out.astype(o_ref.dtype)


def cosine_classifier_base(features_test, cls_weights, scale_cls, bias, *,
                           tile_m=512, tile_n=512,
                           matmul_dtype=jnp.bfloat16,
                           out_dtype=jnp.float32,
                           vmem_budget=12 << 20):
    """cls_scores = scale_cls * (bias + normalize(x, -1) @ normalize(w, 0))."""
    n, f = features_test.shape
    f2, c = cls_weights.shape
    assert f == f2

    scale = scale_cls.astype(jnp.float32).reshape(-1)[:1]        # (1,)
    b = bias.astype(jnp.float32).reshape(-1)[:1]                 # (1,)
    sb = scale * b                                               # scale_cls * bias

    # MXU operand dtype (bf16 by default: full-rate MXU, half the DMA/VMEM).
    x = features_test
    w = cls_weights
    if matmul_dtype is not None and x.dtype != matmul_dtype:
        x = x.astype(matmul_dtype)
    if matmul_dtype is not None and w.dtype != matmul_dtype:
        w = w.astype(matmul_dtype)

    # Weight-column inverse norms (f32 math over the MXU-dtype weights, fused
    # by XLA with the cast pass), with scale_cls folded in.
    wf = w.astype(jnp.float32)
    col_factor = scale.reshape(1, 1) * lax.rsqrt(
        jnp.maximum(jnp.sum(wf * wf, axis=0, keepdims=True), 1e-24))  # (1, c)

    # --- Tile selection -----------------------------------------------------
    # Rows aligned to 8 (sublanes), class columns aligned to 128 (lane-dense
    # output + full MXU tiles).  The feature dim is passed as a full-extent
    # block (no padding, no tiling).  Tiles are shrunk until the
    # double-buffered working set fits the scoped-VMEM defaults of all chips.
    xb = jnp.dtype(x.dtype).itemsize
    wb = jnp.dtype(w.dtype).itemsize
    ob = jnp.dtype(out_dtype).itemsize

    def working_set(tm_, tn_):
        return (2 * tm_ * f * xb        # x tile, double-buffered
                + 2 * f * tn_ * wb      # w tile, double-buffered
                + 2 * tn_ * 4           # column factors
                + 2 * tm_ * tn_ * ob)   # output tile, double-buffered

    tm, n_tiles = _balanced_tiles(n, tile_m, 8)
    tn, c_tiles = _balanced_tiles(c, tile_n, 128)
    while working_set(tm, tn) > vmem_budget and tn > 128:
        tile_n = max(tn // 2, 128)
        tn, c_tiles = _balanced_tiles(c, tile_n, 128)
    while working_set(tm, tn) > vmem_budget and tm > 8:
        tile_m = max(tm // 2, 8)
        tm, n_tiles = _balanced_tiles(n, tile_m, 8)

    n_pad = tm * n_tiles
    c_pad = tn * c_tiles
    if n_pad != n:
        x = jnp.pad(x, ((0, n_pad - n), (0, 0)))
    if c_pad != c:
        w = jnp.pad(w, ((0, 0), (0, c_pad - c)))
        col_factor = jnp.pad(col_factor, ((0, 0), (0, c_pad - c)))

    out = pl.pallas_call(
        _cosine_scores_kernel,
        out_shape=jax.ShapeDtypeStruct((n_pad, c_pad), out_dtype),
        grid=(n_tiles, c_tiles),
        in_specs=[
            pl.BlockSpec(memory_space=pltpu.SMEM),              # sb (1,)
            pl.BlockSpec((tm, f), lambda i, j: (i, 0)),         # feature tile
            pl.BlockSpec((f, tn), lambda i, j: (0, j)),         # weight tile
            pl.BlockSpec((1, tn), lambda i, j: (0, j)),         # column factors
        ],
        out_specs=pl.BlockSpec((tm, tn), lambda i, j: (i, j)),
        compiler_params=pltpu.CompilerParams(
            dimension_semantics=("parallel", "parallel")),      # megacore on v7x
    )(sb, x, w, col_factor)

    return out[:n, :c]


def _novel_class_weights(features_train, labels_train, n_knovel):
    """Summed normalized exemplar features per class -> (fSz, nKnovel)."""
    ft = features_train.astype(jnp.float32)
    ft = ft * lax.rsqrt(
        jnp.maximum(jnp.sum(ft * ft, axis=-1, keepdims=True), 1e-24))
    onehot = jax.nn.one_hot(labels_train, n_knovel, dtype=jnp.float32)  # (nEx, nK)
    return jnp.dot(onehot.T, ft, precision=lax.Precision.HIGHEST).T    # (fSz, nK)


def cosine_classifier_novel(features_test, features_train, labels_train,
                            scale_cls, bias, n_knovel, **kwargs):
    """Novel phase: class weights built from exemplars, then the shared kernel.

    n_knovel must be a static Python int (jit-safe, no device->host sync).
    The exemplar one-hot scatter-sum is cheap O(nEx*fSz) JAX glue; the column
    re-normalization, matmul and epilogue run in the Pallas kernel (the
    kernel's column rsqrt makes sum-vs-mean equivalent, as in the PyTorch
    module, which also relies on that re-normalization).
    """
    # TODO(synk): the PyTorch label-set assertion (labels == range(nKnovel))
    # is a host-side check and is not replicated here.
    cls_weights = _novel_class_weights(features_train, labels_train, n_knovel)
    return cosine_classifier_base(features_test, cls_weights, scale_cls, bias,
                                  **kwargs)


# ----------------------------- references ---------------------------------

def _reference_base(features_test, cls_weights, scale_cls, bias):
    x = features_test.astype(jnp.float32)
    xn = x / jnp.maximum(jnp.linalg.norm(x, axis=-1, keepdims=True), 1e-12)
    w = cls_weights.astype(jnp.float32)
    wn = w / jnp.maximum(jnp.linalg.norm(w, axis=0, keepdims=True), 1e-12)
    dots = jnp.dot(xn, wn, precision=lax.Precision.HIGHEST)
    return scale_cls.reshape(-1)[0] * (bias.reshape(-1)[0] + dots)


def _reference_base_quantized(features_test, cls_weights, scale_cls, bias,
                              dtype=jnp.bfloat16):
    # Same math as _reference_base but with the operands rounded to the MXU
    # dtype, so it isolates kernel plumbing errors from bf16 rounding.
    xq = features_test.astype(dtype).astype(jnp.float32)
    wq = cls_weights.astype(dtype).astype(jnp.float32)
    return _reference_base(xq, wq, scale_cls, bias)


def _check(out, x, w, scale_cls, bias):
    ref_q = _reference_base_quantized(x, w, scale_cls, bias)
    assert jnp.allclose(out, ref_q, atol=2e-3, rtol=2e-3), (
        "mismatch vs bf16-quantized reference")
    ref = _reference_base(x, w, scale_cls, bias)
    assert jnp.allclose(out, ref, atol=1e-1, rtol=5e-2), (
        "mismatch vs f32 reference")


if __name__ == "__main__":
    key = jax.random.PRNGKey(0)
    k1, k2, k3, k4, k5 = jax.random.split(key, 5)

    # Small shapes consistent with the module: fSz=32 features, nClasses=16.
    N, fSz, nClasses = 8, 32, 16

    # Deterministic parameter init mirroring __init__:
    #   weight_base ~ N(0, sqrt(2/fSz)), scale_cls = 10.0, bias = 0.0
    weight_base = jax.random.normal(k1, (fSz, nClasses), jnp.float32) * np.sqrt(2.0 / fSz)
    scale_cls = jnp.full((1,), 10.0, jnp.float32)
    bias = jnp.zeros((1,), jnp.float32)
    features_test = jax.random.normal(k2, (N, fSz), jnp.float32)

    # ---- Base phase --------------------------------------------------------
    out = cosine_classifier_base(features_test, weight_base, scale_cls, bias)
    out = jax.block_until_ready(out)
    assert out.shape == (N, nClasses)
    _check(out, features_test, weight_base, scale_cls, bias)

    # ---- Base phase, padded + multi-tile grid (exercises row/col padding,
    # class-dim grid axis and the (i, j) index maps) --------------------------
    N2, C2 = 20, 200
    w2 = jax.random.normal(k4, (fSz, C2), jnp.float32) * np.sqrt(2.0 / fSz)
    x2 = jax.random.normal(k5, (N2, fSz), jnp.float32)
    out2 = cosine_classifier_base(x2, w2, scale_cls, bias, tile_m=8, tile_n=128)
    out2 = jax.block_until_ready(out2)
    assert out2.shape == (N2, C2)
    _check(out2, x2, w2, scale_cls, bias)

    # ---- Novel phase -------------------------------------------------------
    nK, nEx = 4, 8
    labels_train = jnp.arange(nEx, dtype=jnp.int32) % nK   # covers 0..nK-1
    features_train = jax.random.normal(k3, (nEx, fSz), jnp.float32)
    out_novel = cosine_classifier_novel(features_test, features_train,
                                        labels_train, scale_cls, bias, nK)
    out_novel = jax.block_until_ready(out_novel)
    assert out_novel.shape == (N, nK)
    cw_novel = _novel_class_weights(features_train, labels_train, nK)
    _check(out_novel, features_test, cw_novel, scale_cls, bias)

    print("KERNEL_OK")
</pallas_src>

<mosaic_0001>
module attributes {stable_mosaic.version = 11 : i64} {
  func.func @_cosine_scores_kernel(%arg0: i32, %arg1: i32, %arg2: memref<1xf32, #tpu.memory_space<smem>>, %arg3: memref<8x32xbf16, #tpu.memory_space<vmem>>, %arg4: memref<32x128xbf16, #tpu.memory_space<vmem>>, %arg5: memref<1x128xf32, #tpu.memory_space<vmem>>, %arg6: memref<8x128xf32, #tpu.memory_space<vmem>>) attributes {dimension_semantics = [#tpu.dimension_semantics<parallel>, #tpu.dimension_semantics<parallel>], iteration_bounds = array<i64: 1, 1>, scalar_prefetch = 0 : i64, scratch_operands = 0 : i64, tpu.core_type = #tpu.core_type<tc>, window_params = [{transform_indices = @transform_0, window_bounds = array<i64: 1>}, {transform_indices = @transform_1, window_bounds = array<i64: 8, 32>}, {transform_indices = @transform_2, window_bounds = array<i64: 32, 128>}, {transform_indices = @transform_3, window_bounds = array<i64: 1, 128>}, {transform_indices = @transform_4, window_bounds = array<i64: 8, 128>}]} {
    %c0 = arith.constant 0 : index
    %c0_0 = arith.constant 0 : index
    %0 = vector.load %arg3[%c0, %c0_0] : memref<8x32xbf16, #tpu.memory_space<vmem>>, vector<8x32xbf16>
    %c0_1 = arith.constant 0 : index
    %c0_2 = arith.constant 0 : index
    %1 = vector.load %arg4[%c0_1, %c0_2] : memref<32x128xbf16, #tpu.memory_space<vmem>>, vector<32x128xbf16>
    %cst = arith.constant dense<0.000000e+00> : vector<8x128xf32>
    %2 = tpu.matmul %0, %1, %cst {dimension_numbers = #tpu.dot_dimension_numbers<[1], [0], [0], [1], [0, 0, 1, 1], [], []>} : vector<8x32xbf16>, vector<32x128xbf16>, vector<8x128xf32> -> vector<8x128xf32>
    %3 = arith.extf %0 : vector<8x32xbf16> to vector<8x32xf32>
    %4 = arith.mulf %3, %3 : vector<8x32xf32>
    %cst_3 = arith.constant dense<0.000000e+00> : vector<8xf32>
    %5 = vector.multi_reduction <add>, %4, %cst_3 [1] : vector<8x32xf32> to vector<8xf32>
    %6 = vector.shape_cast %5 : vector<8xf32> to vector<8x1xf32>
    %cst_4 = arith.constant 1.000000e-24 : f32
    %7 = vector.broadcast %cst_4 : f32 to vector<8x1xf32>
    %8 = arith.maximumf %6, %7 : vector<8x1xf32>
    %9 = math.rsqrt %8 : vector<8x1xf32>
    %10 = vector.broadcast %9 : vector<8x1xf32> to vector<8x128xf32>
    %11 = arith.mulf %2, %10 : vector<8x128xf32>
    %c0_5 = arith.constant 0 : index
    %c0_6 = arith.constant 0 : index
    %12 = vector.load %arg5[%c0_5, %c0_6] : memref<1x128xf32, #tpu.memory_space<vmem>>, vector<1x128xf32>
    %13 = vector.broadcast %12 : vector<1x128xf32> to vector<8x128xf32>
    %14 = arith.mulf %11, %13 : vector<8x128xf32>
    %c0_7 = arith.constant 0 : index
    %15 = memref.load %arg2[%c0_7] : memref<1xf32, #tpu.memory_space<smem>>
    %16 = vector.broadcast %15 : f32 to vector<8x128xf32>
    %17 = arith.addf %14, %16 : vector<8x128xf32>
    %c0_8 = arith.constant 0 : index
    %c0_9 = arith.constant 0 : index
    %18 = vector.load %arg6[%c0_8, %c0_9] : memref<8x128xf32, #tpu.memory_space<vmem>>, vector<8x128xf32>
    tpu.vector_store %arg6[%c0_8, %c0_9], %17 {strides = array<i32>} : memref<8x128xf32, #tpu.memory_space<vmem>>, vector<8x128xf32>,
    return
  }
  func.func @transform_0(%arg0: i32, %arg1: i32) -> i32 {
    %c0_i32 = arith.constant 0 : i32
    %c0_i32_0 = arith.constant 0 : i32
    return %c0_i32 : i32
  }
  func.func @transform_1(%arg0: i32, %arg1: i32) -> (i32, i32) {
    %c0_i32 = arith.constant 0 : i32
    %c0_i32_0 = arith.constant 0 : i32
    return %arg0, %c0_i32 : i32, i32
  }
  func.func @transform_2(%arg0: i32, %arg1: i32) -> (i32, i32) {
    %c0_i32 = arith.constant 0 : i32
    %c0_i32_0 = arith.constant 0 : i32
    return %c0_i32, %arg1 : i32, i32
  }
  func.func @transform_3(%arg0: i32, %arg1: i32) -> (i32, i32) {
    %c0_i32 = arith.constant 0 : i32
    %c0_i32_0 = arith.constant 0 : i32
    return %c0_i32, %arg1 : i32, i32
  }
  func.func @transform_4(%arg0: i32, %arg1: i32) -> (i32, i32) {
    %c0_i32 = arith.constant 0 : i32
    return %arg0, %arg1 : i32, i32
  }
}

</mosaic_0001>

<llo_original>
// kernel: tpu_custom_call.1
$region0: #{tpu_custom_call.1}
  #allocation0 [shape = 'u32[]', space=smem, size = 0x4, offset = 0x4, fixed_abs, tag = 'smem constant byte address 0x4 - core index']
  #allocation1 [shape = 'u32[144,128]{1,0:T(1,128)}', space=vmem, size = 0x12000, scoped, tag = 'internal scratch']
  #allocation2 [shape = 'f32[1]{0:T(128)S(6)}', space=smem, size = 0x200, scoped, tag = 'scoped memory for tpu_custom_call.1']
  %s0 = inlined_call_operand.<no memory space> [shape: f32[1], index: 0, kind: input, shape index: {}]
  %s1 = inlined_call_operand.hbm [shape: bf16[8,32], index: 1, kind: input, shape index: {}]
  %s2 = inlined_call_operand.hbm [shape: bf16[32,128], index: 2, kind: input, shape index: {}]
  %s3 = inlined_call_operand.vmem [shape: f32[1,128], index: 3, kind: input, shape index: {}]
  %s4 = inlined_call_operand.hbm [shape: f32[8,128], index: 4, kind: output, shape index: {}]
  %s5 = sld [smem:[#allocation0]]
  $region34: #{tpu_custom_call.1} parent=0
    _
  %s7 = ssub.s32 1, %s5
  %s8 = scalar_select 0, %s7, %s5
  %9 = sst [smem:[#allocation2]] %s0
  $region1: #{tpu_custom_call.1} parent=0
    #allocation3 [shape = 'u8[2048]{0}', space=vmem, size = 0x800, scoped, tag = 'input window, operand 1, single buffered']
    #allocation4 [shape = 's32[1]{0}', space=sflag, size = 0x4, scoped, tag = 'scoped memory for tpu_custom_call.1']
    #allocation5 [shape = 's32[1]{0}', space=sflag, size = 0x4, scoped, tag = 'scoped memory for tpu_custom_call.1']
    #allocation6 [shape = 'u8[8192]{0}', space=vmem, size = 0x2000, scoped, tag = 'input window, operand 2, single buffered']
    #allocation7 [shape = 's32[1]{0}', space=sflag, size = 0x4, scoped, tag = 'scoped memory for tpu_custom_call.1']
    #allocation8 [shape = 'u8[4096]{0}', space=vmem, size = 0x1000, scoped, tag = 'output window, operand 0, single buffered']
    %10 = vsyncpa [#allocation4], 0
    %11 = vsyncpa [#allocation7], 0
    %12 = vsyncpa [#allocation5], 0
    // Predicated region
    $region2: #{tpu_custom_call.1} parent=1 // pred_check
      _
    $region3: #{tpu_custom_call.1} parent=1 // pred_check_branch
      %14 = sbr.rel (0) target = $region5
    $region4: #{tpu_custom_call.1} parent=1 // pred_region
      _
    $region5: #{tpu_custom_call.1} parent=1 // pred_fallthru
      _
    // Predicated region
    $region6: #{tpu_custom_call.1} parent=1 // pred_check
      _
    $region7: #{tpu_custom_call.1} parent=1 // pred_check_branch
      %16 = sbr.rel (0) target = $region9
    $region8: #{tpu_custom_call.1} parent=1 // pred_region
      %s18 = ssub.s32 64, 64
      %19 = vsyncadd [#allocation4], %s18
      %s21 = sshll.u32 [#allocation3], 4
      %s22 = int_to_ptr.vmem [resolvable:$true] %s21
      %24 = dma.hbm_to_vmem [thread:$0]  %s1, 64, %s22, [#allocation4]
    $region9: #{tpu_custom_call.1} parent=1 // pred_fallthru
      _
    // Predicated region
    $region10: #{tpu_custom_call.1} parent=1 // pred_check
      _
    $region11: #{tpu_custom_call.1} parent=1 // pred_check_branch
      %26 = sbr.rel (0) target = $region13
    $region12: #{tpu_custom_call.1} parent=1 // pred_region
      %s28 = ssub.s32 256, 256
      %29 = vsyncadd [#allocation7], %s28
      %s30 = sshll.u32 [#allocation6], 4
      %s31 = int_to_ptr.vmem [resolvable:$true] %s30
      %36 = dma.hbm_to_vmem [thread:$0]  %s2, 256, %s31, [#allocation7], 64, 64, 4
    $region13: #{tpu_custom_call.1} parent=1 // pred_fallthru
      _
    // Predicated region
    $region14: #{tpu_custom_call.1} parent=1 // pred_check
      _
    $region15: #{tpu_custom_call.1} parent=1 // pred_check_branch
      %38 = sbr.rel (0) target = $region17
    $region16: #{tpu_custom_call.1} parent=1 // pred_region
      _
    $region17: #{tpu_custom_call.1} parent=1 // pred_fallthru
      _
    // Predicated region
    $region18: #{tpu_custom_call.1} parent=1 // pred_check
      _
    $region19: #{tpu_custom_call.1} parent=1 // pred_check_branch
      %40 = sbr.rel (0) target = $region21
    $region20: #{tpu_custom_call.1} parent=1 // pred_region
      %41 = dma.done [#allocation4], 64
    $region21: #{tpu_custom_call.1} parent=1 // pred_fallthru
      _
    // Predicated region
    $region22: #{tpu_custom_call.1} parent=1 // pred_check
      _
    $region23: #{tpu_custom_call.1} parent=1 // pred_check_branch
      %43 = sbr.rel (0) target = $region25
    $region24: #{tpu_custom_call.1} parent=1 // pred_region
      %44 = dma.done [#allocation7], 256
    $region25: #{tpu_custom_call.1} parent=1 // pred_fallthru
      _
    %v46 = vld [vmem:[#allocation3] sm:$0xf]
    %v47 = vld [vmem:[#allocation6] sm:$0xf]
    %v48 = vld [vmem:[#allocation6 + $0x4] sm:$0xf]
    %v49 = vld [vmem:[#allocation6 + $0x8] sm:$0xf]
    %v50 = vld [vmem:[#allocation6 + $0xc] sm:$0xf]
    %v55 = vunpack.c.l.b16 %v47
    %v56 = vunpack.c.l.b16 %v48
    %v57 = vunpack.c.l.b16 %v49
    %v58 = vunpack.c.l.b16 %v50
    %v59 = vpack.c.b16 %v56, %v55
    %v60 = vpack.c.b16 %v58, %v57
    %vm63 = vcmask 261120
    %v65 = vsel %vm63, %v46, 0
    %67 = vmatprep.subr.bf16.mxu0 0
    %68 = vmatpush1.bf16.msra.mxu0 %v59
    %69 = vmatprep.subr.bf16.mxu0 0
    %70 = vmatpush1.bf16.msra.mxu0 %v60
    %71 = vmatprep.subr.bf16.mxu0 0
    %72 = vmatpush1.bf16.msra.mxu0 0
    %73 = vmatprep.subr.bf16.mxu0 0
    %74 = vmatpush1.bf16.msra.mxu0 0
    %75 = vmatprep.subr.bf16.mxu0 0
    %76 = vmatpush1.bf16.msra.mxu0 0
    %77 = vmatprep.subr.bf16.mxu0 0
    %78 = vmatpush1.bf16.msra.mxu0 0
    %79 = vmatprep.subr.bf16.mxu0 0
    %80 = vmatpush1.bf16.msra.mxu0 0
    %81 = vmatprep.subr.bf16.mxu0 0
    %82 = vmatpush1.bf16.msra.mxu0 0
    %83 = vmatprep.subr.bf16.mxu0 0
    %84 = vmatpush1.bf16.msra.mxu0 0
    %85 = vmatprep.subr.bf16.mxu0 0
    %86 = vmatpush1.bf16.msra.mxu0 0
    %87 = vmatprep.subr.bf16.mxu0 0
    %88 = vmatpush1.bf16.msra.mxu0 0
    %89 = vmatprep.subr.bf16.mxu0 0
    %90 = vmatpush1.bf16.msra.mxu0 0
    %91 = vmatprep.subr.bf16.mxu0 0
    %92 = vmatpush1.bf16.msra.mxu0 0
    %93 = vmatprep.subr.bf16.mxu0 0
    %94 = vmatpush1.bf16.msra.mxu0 0
    %95 = vmatprep.subr.bf16.mxu0 0
    %96 = vmatpush1.bf16.msra.mxu0 0
    %97 = vmatprep.subr.bf16.mxu0 0
    %98 = vmatpush1.bf16.msra.mxu0 0
    %99 = vmatprep.mubr.bf16.mxu0 0
    %100 = vmatmul.mubr.bf16.gmra.mrb[0].mxu0 %v65
    %v101 = vpop.f32.mrb[0].mxu0
    %v102 = vadd.f32 0.0, %v101
    %v103 = vpop.f32.mrb[0].mxu0
    %v104 = vpop.f32.mrb[0].mxu0
    %v105 = vpop.f32.mrb[0].mxu0
    %106 = vdwg.mxu0
    %v107 = vunpack.c.l.bf16 %v46
    %v108 = vmul.f32 %v107, %v107
    %v109 = vsel %vm63, %v108, 0.0
    %110 = vadd.xlane.f32.xlu0 %v109
    %v111 = vpop.xlane.xlu0 %110
    %v112 = vmax.f32 %v111, 1e-24
    %v113 = vrsqrt.pop %v112
    %v114 = vmul.f32 %v102, %v113
    %v115 = vld [vmem:[%s3] sm:$0x1]
    %v117 = vlaneseq
    %v118 = vshrl.u32 %v117, 7
    %v119 = vsub.s32 0, %v118
    %v120 = vrot.slane %v115, %v119
    %v122 = vmul.f32 %v114, %v120
    %s123 = sld [smem:[#allocation2]]
    %v124 = vstv %s123
    %v125 = vadd.f32 %v122, %v124
    %126 = vst [vmem:[#allocation8] sm:$0xff] %v125
    // Predicated region
    $region26: #{tpu_custom_call.1} parent=1 // pred_check
      _
    $region27: #{tpu_custom_call.1} parent=1 // pred_check_branch
      %128 = sbr.rel (0) target = $region29
    $region28: #{tpu_custom_call.1} parent=1 // pred_region
      %s130 = ssub.s32 128, 128
      %131 = vsyncadd [#allocation5], %s130
      %s133 = sshll.u32 [#allocation8], 4
      %s134 = int_to_ptr.vmem [resolvable:$true] %s133
      %136 = dma.vmem_to_hbm [thread:$0]  %s134, 128, %s4, [#allocation5]
    $region29: #{tpu_custom_call.1} parent=1 // pred_fallthru
      _
    // Predicated region
    $region30: #{tpu_custom_call.1} parent=1 // pred_check
      _
    $region31: #{tpu_custom_call.1} parent=1 // pred_check_branch
      %138 = sbr.rel (0) target = $region33
    $region32: #{tpu_custom_call.1} parent=1 // pred_region
      %139 = dma.done [#allocation5], 128
    $region33: #{tpu_custom_call.1} parent=1 // pred_fallthru
      _
    %140 = vsyncpa [#allocation4], 1
    %141 = vsyncpa [#allocation7], 1
    %142 = vsyncpa [#allocation5], 1

</llo_original>
